<compile_context>
chip_gen: v7x
topology: tpu7x:2x2x1
jax: 0.10.0
libtpu: 0.0.40
codegen_flags: <defaults>
</compile_context>

<pallas_src>
import functools

import jax
import jax.numpy as jnp
from jax.experimental import pallas as pl
from jax.experimental.pallas import tpu as pltpu


def _round_up(n, m):
    return ((n + m - 1) // m) * m


def _cdiv(a, b):
    return -(-a // b)


def _linear_kernel(x_ref, w_ref, b_ref, o_ref, *, precision):
    # x_ref: (TB, 300) f32 row-slab of X, streamed per grid step.
    # w_ref: (300, 4)  f32 weights, constant index_map -> DMA'd once, resident in VMEM.
    # b_ref: (1, 4)    f32 bias, resident in VMEM.
    # o_ref: (TB, 4)   f32 output block (unpadded -> only 16 B/row written back to HBM).
    y = jnp.dot(
        x_ref[...],
        w_ref[...],
        preferred_element_type=jnp.float32,
        precision=precision,
    )
    o_ref[...] = (y + b_ref[...]).astype(o_ref.dtype)


def _tile_rows(B, max_rows_per_tile):
    """Balanced batch tiling: <8 padded rows per step; >=2 steps for v7x megacore."""
    B8 = _round_up(B, 8)
    grid_n = _cdiv(B8, max_rows_per_tile)
    if grid_n == 1 and B8 > 8:
        # v7x has 2 TensorCores; give the "parallel" batch axis work for both.
        # On v5e/v6e (1 TC) the extra step costs ~0.35 us -> negligible.
        grid_n = 2
    TB = _round_up(_cdiv(B8, grid_n), 8)
    Bp = TB * grid_n
    return TB, Bp, grid_n


def _forward_impl(x, w, b, *, max_rows_per_tile, precision):
    """y = x @ w + b  for Linear(300, 4).

    x: (B, 300) f32; w: (300, 4) f32 (PyTorch weight already transposed, i.e. W.T); b: (4,) f32.
    Returns (B, 4) f32.
    """
    B, D = x.shape
    Dw, O = w.shape
    assert D == Dw and b.shape == (O,)

    TB, Bp, grid_n = _tile_rows(B, max_rows_per_tile)

    # Only row-pad X when the balanced tiling needs it (ragged B). Aligned batches
    # (Bp == B, e.g. B a multiple of TB) stream straight from the caller's buffer
    # with zero repacking -- this is the common large-batch fast path.
    if Bp != B:
        x_in = jnp.zeros((Bp, D), x.dtype).at[:B, :].set(x)
    else:
        x_in = x

    b2 = b.reshape(1, O)  # 2-D so it can live as a tiny (1, O) VMEM block

    # VMEM budget: double-buffered X slab (lanes padded 300->384 in VMEM) + output block
    # (lanes padded 4->128 in VMEM) + resident weights/bias + slack.  Clamp to 64 MiB
    # so we never exceed v7x's physical VMEM; v5e/v6e have 128 MiB physical.
    x_buf = TB * _round_up(D, 128) * 4
    o_buf = TB * 128 * 4
    vmem_limit = min(max(2 * (x_buf + o_buf) + (4 << 20), 32 << 20), 64 << 20)

    cost = pl.CostEstimate(
        flops=2 * Bp * D * O,
        transcendentals=0,
        bytes_accessed=x_in.size * 4 + w.size * 4 + b.size * 4 + Bp * O * 4,
    )

    out = pl.pallas_call(
        functools.partial(_linear_kernel, precision=precision),
        out_shape=jax.ShapeDtypeStruct((Bp, O), jnp.float32),
        grid_spec=pl.GridSpec(
            grid=(grid_n,),
            in_specs=[
                # X: one (TB, 300) row-slab per grid step (last dim == full array dim).
                pl.BlockSpec((TB, D), lambda i: (i, 0)),
                # W: constant index_map -> fetched once, stays resident in VMEM.
                pl.BlockSpec((D, O), lambda i: (0, 0)),
                # bias: tiny resident block.
                pl.BlockSpec((1, O), lambda i: (0, 0)),
            ],
            out_specs=pl.BlockSpec((TB, O), lambda i: (i, 0)),
        ),
        compiler_params=pltpu.CompilerParams(
            # Batch tiles are independent -> shard across TensorCores on v7x.
            dimension_semantics=("parallel",),
            vmem_limit_bytes=vmem_limit,
        ),
        cost_estimate=cost,
    )(x_in, w, b2)

    return out[:B, :] if Bp != B else out


@jax.jit
def logistic_regression_forward(x, w, b):
    # Defaults tuned per review: 4096-row tiles (good on v5e/v6e, fits v7x's 64 MiB VMEM),
    # f32-exact matmul. On v5e, if the kernel measures MXU-bound, drop precision to
    # jax.lax.Precision.HIGH and re-validate the 1e-5 tolerance.
    return _forward_impl(
        x, w, b,
        max_rows_per_tile=4096,
        precision=jax.lax.Precision.HIGHEST,
    )


if __name__ == "__main__":
    key = jax.random.PRNGKey(0)
    kx, kw, kb = jax.random.split(key, 3)

    B, D, O = 8, 300, 4

    # Deterministic synthetic input.
    x = jax.random.normal(kx, (B, D), dtype=jnp.float32)

    # Deterministic parameter init matching torch.nn.Linear's default
    # (uniform in +/- 1/sqrt(in_features)); w is stored as W.T, i.e. (in, out).
    bound = 1.0 / jnp.sqrt(jnp.float32(D))
    w = jax.random.uniform(kw, (D, O), dtype=jnp.float32, minval=-bound, maxval=bound)
    b = jax.random.uniform(kb, (O,), dtype=jnp.float32, minval=-bound, maxval=bound)

    # Aligned-batch fast path (no padding, single-block grid).
    y = jax.block_until_ready(logistic_regression_forward(x, w, b))
    y_ref = jnp.dot(x, w, precision=jax.lax.Precision.HIGHEST) + b
    assert y.shape == (B, O)
    assert jnp.allclose(y, y_ref, atol=1e-5, rtol=1e-5)

    # Ragged batch path (exercises row padding + multi-step "parallel" grid + output slice).
    B2 = 20
    x2 = jax.random.normal(kx, (B2, D), dtype=jnp.float32)
    y2 = jax.block_until_ready(logistic_regression_forward(x2, w, b))
    y2_ref = jnp.dot(x2, w, precision=jax.lax.Precision.HIGHEST) + b
    assert y2.shape == (B2, O)
    assert jnp.allclose(y2, y2_ref, atol=1e-5, rtol=1e-5)

    print("KERNEL_OK")
</pallas_src>

<mosaic_0001>
module attributes {stable_mosaic.version = 11 : i64} {
  func.func @_linear_kernel(%arg0: i32, %arg1: memref<8x300xf32, #tpu.memory_space<vmem>>, %arg2: memref<300x4xf32, #tpu.memory_space<vmem>>, %arg3: memref<1x4xf32, #tpu.memory_space<vmem>>, %arg4: memref<8x4xf32, #tpu.memory_space<vmem>>) attributes {dimension_semantics = [#tpu.dimension_semantics<parallel>], iteration_bounds = array<i64: 1>, scalar_prefetch = 0 : i64, scratch_operands = 0 : i64, tpu.core_type = #tpu.core_type<tc>, window_params = [{transform_indices = @transform_0, window_bounds = array<i64: 8, 300>}, {pipeline_mode = #tpu.pipeline_mode<synchronous>, transform_indices = @transform_1, window_bounds = array<i64: 300, 4>}, {pipeline_mode = #tpu.pipeline_mode<synchronous>, transform_indices = @transform_2, window_bounds = array<i64: 1, 4>}, {transform_indices = @transform_3, window_bounds = array<i64: 8, 4>}]} {
    %c0 = arith.constant 0 : index
    %c0_0 = arith.constant 0 : index
    %0 = vector.load %arg1[%c0, %c0_0] : memref<8x300xf32, #tpu.memory_space<vmem>>, vector<8x300xf32>
    %c0_1 = arith.constant 0 : index
    %c0_2 = arith.constant 0 : index
    %1 = vector.load %arg2[%c0_1, %c0_2] : memref<300x4xf32, #tpu.memory_space<vmem>>, vector<300x4xf32>
    %cst = arith.constant dense<0.000000e+00> : vector<8x4xf32>
    %2 = tpu.matmul %0, %1, %cst {dimension_numbers = #tpu.dot_dimension_numbers<[1], [0], [0], [1], [0, 0, 1, 1], [], []>, precision = #tpu.contract_precision<fp32>} : vector<8x300xf32>, vector<300x4xf32>, vector<8x4xf32> -> vector<8x4xf32>
    %c0_3 = arith.constant 0 : index
    %c0_4 = arith.constant 0 : index
    %3 = vector.load %arg3[%c0_3, %c0_4] : memref<1x4xf32, #tpu.memory_space<vmem>>, vector<1x4xf32>
    %4 = vector.broadcast %3 : vector<1x4xf32> to vector<8x4xf32>
    %5 = arith.addf %2, %4 : vector<8x4xf32>
    %c0_5 = arith.constant 0 : index
    %c0_6 = arith.constant 0 : index
    %6 = vector.load %arg4[%c0_5, %c0_6] : memref<8x4xf32, #tpu.memory_space<vmem>>, vector<8x4xf32>
    tpu.vector_store %arg4[%c0_5, %c0_6], %5 {strides = array<i32>} : memref<8x4xf32, #tpu.memory_space<vmem>>, vector<8x4xf32>,
    return
  }
  func.func @transform_0(%arg0: i32) -> (i32, i32) {
    %c0_i32 = arith.constant 0 : i32
    %c0_i32_0 = arith.constant 0 : i32
    return %arg0, %c0_i32 : i32, i32
  }
  func.func @transform_1(%arg0: i32) -> (i32, i32) {
    %c0_i32 = arith.constant 0 : i32
    %c0_i32_0 = arith.constant 0 : i32
    %c0_i32_1 = arith.constant 0 : i32
    return %c0_i32, %c0_i32_0 : i32, i32
  }
  func.func @transform_2(%arg0: i32) -> (i32, i32) {
    %c0_i32 = arith.constant 0 : i32
    %c0_i32_0 = arith.constant 0 : i32
    %c0_i32_1 = arith.constant 0 : i32
    return %c0_i32, %c0_i32_0 : i32, i32
  }
  func.func @transform_3(%arg0: i32) -> (i32, i32) {
    %c0_i32 = arith.constant 0 : i32
    %c0_i32_0 = arith.constant 0 : i32
    return %arg0, %c0_i32 : i32, i32
  }
}

</mosaic_0001>

<llo_original>
// kernel: logistic_regression_forward.1
$region0: #{logistic_regression_forward.1}
  #allocation0 [shape = 'u32[]', space=smem, size = 0x4, offset = 0x4, fixed_abs, tag = 'smem constant byte address 0x4 - core index']
  #allocation1 [shape = 'u32[144,128]{1,0:T(1,128)}', space=vmem, size = 0x12000, scoped, tag = 'internal scratch']
  %s0 = inlined_call_operand.vmem [shape: f32[8,300], index: 0, kind: input, shape index: {}]
  %s1 = inlined_call_operand.vmem [shape: f32[300,4], index: 1, kind: input, shape index: {}]
  %s2 = inlined_call_operand.vmem [shape: f32[1,4], index: 2, kind: input, shape index: {}]
  %s3 = inlined_call_operand.vmem [shape: f32[8,4], index: 3, kind: output, shape index: {}]
  %s4 = sld [smem:[#allocation0]]
  $region22: #{logistic_regression_forward.1} parent=0
    _
  %s6 = ssub.s32 1, %s4
  %s7 = scalar_select 0, %s6, %s4
  // Predicated region
  $region2: #{logistic_regression_forward.1} parent=0 // pred_check
    _
  $region3: #{logistic_regression_forward.1} parent=0 // pred_check_branch
    %9 = sbr.rel (0) target = $region5
  $region4: #{logistic_regression_forward.1} parent=0 // pred_region
    _
  $region5: #{logistic_regression_forward.1} parent=0 // pred_fallthru
    _
  // Predicated region
  $region6: #{logistic_regression_forward.1} parent=0 // pred_check
    _
  $region7: #{logistic_regression_forward.1} parent=0 // pred_check_branch
    %11 = sbr.rel (0) target = $region9
  $region8: #{logistic_regression_forward.1} parent=0 // pred_region
    _
  $region9: #{logistic_regression_forward.1} parent=0 // pred_fallthru
    _
  // Predicated region
  $region10: #{logistic_regression_forward.1} parent=0 // pred_check
    _
  $region11: #{logistic_regression_forward.1} parent=0 // pred_check_branch
    %13 = sbr.rel (0) target = $region13
  $region12: #{logistic_regression_forward.1} parent=0 // pred_region
    _
  $region13: #{logistic_regression_forward.1} parent=0 // pred_fallthru
    _
  %v14 = vld [vmem:[%s0] sm:$0xff]
  %v15 = vld [vmem:[%s0 + $0x8] sm:$0xff]
  %v16 = vld [vmem:[%s0 + $0x10] sm:$0xff]
  %v17 = vld [vmem:[%s1] sm:$0xff]
  %v18 = vld [vmem:[%s1 + $0x8] sm:$0xff]
  %v19 = vld [vmem:[%s1 + $0x10] sm:$0xff]
  %v20 = vld [vmem:[%s1 + $0x18] sm:$0xff]
  %v21 = vld [vmem:[%s1 + $0x20] sm:$0xff]
  %v22 = vld [vmem:[%s1 + $0x28] sm:$0xff]
  %v23 = vld [vmem:[%s1 + $0x30] sm:$0xff]
  %v24 = vld [vmem:[%s1 + $0x38] sm:$0xff]
  %v25 = vld [vmem:[%s1 + $0x40] sm:$0xff]
  %v26 = vld [vmem:[%s1 + $0x48] sm:$0xff]
  %v27 = vld [vmem:[%s1 + $0x50] sm:$0xff]
  %v28 = vld [vmem:[%s1 + $0x58] sm:$0xff]
  %v29 = vld [vmem:[%s1 + $0x60] sm:$0xff]
  %v30 = vld [vmem:[%s1 + $0x68] sm:$0xff]
  %v31 = vld [vmem:[%s1 + $0x70] sm:$0xff]
  %v32 = vld [vmem:[%s1 + $0x78] sm:$0xff]
  %v33 = vld [vmem:[%s1 + $0x80] sm:$0xff]
  %v34 = vld [vmem:[%s1 + $0x88] sm:$0xff]
  %v35 = vld [vmem:[%s1 + $0x90] sm:$0xff]
  %v36 = vld [vmem:[%s1 + $0x98] sm:$0xff]
  %v37 = vld [vmem:[%s1 + $0xa0] sm:$0xff]
  %v38 = vld [vmem:[%s1 + $0xa8] sm:$0xff]
  %v39 = vld [vmem:[%s1 + $0xb0] sm:$0xff]
  %v40 = vld [vmem:[%s1 + $0xb8] sm:$0xff]
  %v41 = vld [vmem:[%s1 + $0xc0] sm:$0xff]
  %v42 = vld [vmem:[%s1 + $0xc8] sm:$0xff]
  %v43 = vld [vmem:[%s1 + $0xd0] sm:$0xff]
  %v44 = vld [vmem:[%s1 + $0xd8] sm:$0xff]
  %v45 = vld [vmem:[%s1 + $0xe0] sm:$0xff]
  %v46 = vld [vmem:[%s1 + $0xe8] sm:$0xff]
  %v47 = vld [vmem:[%s1 + $0xf0] sm:$0xff]
  %v48 = vld [vmem:[%s1 + $0xf8] sm:$0xff]
  %v49 = vld [vmem:[%s1 + $0x100] sm:$0xff]
  %v50 = vld [vmem:[%s1 + $0x108] sm:$0xff]
  %v51 = vld [vmem:[%s1 + $0x110] sm:$0xff]
  %v52 = vld [vmem:[%s1 + $0x118] sm:$0xff]
  %v53 = vld [vmem:[%s1 + $0x120] sm:$0xff]
  %v54 = vld [vmem:[%s1 + $0x128] sm:$0xf]
  %v55 = vld [vmem:[%s2] sm:$0x1]
  %v57 = vlaneseq
  %v58 = vshrl.u32 %v57, 7
  %v59 = vsub.s32 0, %v58
  %v60 = vrot.slane %v55, %v59
  %vm62 = vcmask 359424
  %v64 = vsel %vm62, %v16, 0
  %vm66 = vcmask 1043456
  %v68 = vsel %vm66, %v54, 0
  %70 = vmatprep.subr.mxu0 0.0
  %v71 = vand.u32 %v17, 4294901760
  %72 = vmatpush1.msra.mxu0 %v71
  %73 = vmatprep.subr.mxu0 0.0
  %v74 = vand.u32 %v18, 4294901760
  %75 = vmatpush1.msra.mxu0 %v74
  %76 = vmatprep.subr.mxu0 0.0
  %v77 = vand.u32 %v19, 4294901760
  %78 = vmatpush1.msra.mxu0 %v77
  %79 = vmatprep.subr.mxu0 0.0
  %v80 = vand.u32 %v20, 4294901760
  %81 = vmatpush1.msra.mxu0 %v80
  %82 = vmatprep.subr.mxu0 0.0
  %v83 = vand.u32 %v21, 4294901760
  %84 = vmatpush1.msra.mxu0 %v83
  %85 = vmatprep.subr.mxu0 0.0
  %v86 = vand.u32 %v22, 4294901760
  %87 = vmatpush1.msra.mxu0 %v86
  %88 = vmatprep.subr.mxu0 0.0
  %v89 = vand.u32 %v23, 4294901760
  %90 = vmatpush1.msra.mxu0 %v89
  %91 = vmatprep.subr.mxu0 0.0
  %v92 = vand.u32 %v24, 4294901760
  %93 = vmatpush1.msra.mxu0 %v92
  %94 = vmatprep.subr.mxu0 0.0
  %v95 = vand.u32 %v25, 4294901760
  %96 = vmatpush1.msra.mxu0 %v95
  %97 = vmatprep.subr.mxu0 0.0
  %v98 = vand.u32 %v26, 4294901760
  %99 = vmatpush1.msra.mxu0 %v98
  %100 = vmatprep.subr.mxu0 0.0
  %v101 = vand.u32 %v27, 4294901760
  %102 = vmatpush1.msra.mxu0 %v101
  %103 = vmatprep.subr.mxu0 0.0
  %v104 = vand.u32 %v28, 4294901760
  %105 = vmatpush1.msra.mxu0 %v104
  %106 = vmatprep.subr.mxu0 0.0
  %v107 = vand.u32 %v29, 4294901760
  %108 = vmatpush1.msra.mxu0 %v107
  %109 = vmatprep.subr.mxu0 0.0
  %v110 = vand.u32 %v30, 4294901760
  %111 = vmatpush1.msra.mxu0 %v110
  %112 = vmatprep.subr.mxu0 0.0
  %v113 = vand.u32 %v31, 4294901760
  %114 = vmatpush1.msra.mxu0 %v113
  %115 = vmatprep.subr.mxu0 0.0
  %v116 = vand.u32 %v32, 4294901760
  %117 = vmatpush1.msra.mxu0 %v116
  %118 = vmatprep.subr.mxu0 0.0
  %v119 = vand.u32 %v33, 4294901760
  %120 = vmatpush1.msra.mxu0 %v119
  %121 = vmatprep.subr.mxu0 0.0
  %v122 = vand.u32 %v34, 4294901760
  %123 = vmatpush1.msra.mxu0 %v122
  %124 = vmatprep.subr.mxu0 0.0
  %v125 = vand.u32 %v35, 4294901760
  %126 = vmatpush1.msra.mxu0 %v125
  %127 = vmatprep.subr.mxu0 0.0
  %v128 = vand.u32 %v36, 4294901760
  %129 = vmatpush1.msra.mxu0 %v128
  %130 = vmatprep.subr.mxu0 0.0
  %v131 = vand.u32 %v37, 4294901760
  %132 = vmatpush1.msra.mxu0 %v131
  %133 = vmatprep.subr.mxu0 0.0
  %v134 = vand.u32 %v38, 4294901760
  %135 = vmatpush1.msra.mxu0 %v134
  %136 = vmatprep.subr.mxu0 0.0
  %v137 = vand.u32 %v39, 4294901760
  %138 = vmatpush1.msra.mxu0 %v137
  %139 = vmatprep.subr.mxu0 0.0
  %v140 = vand.u32 %v40, 4294901760
  %141 = vmatpush1.msra.mxu0 %v140
  %142 = vmatprep.subr.mxu0 0.0
  %v143 = vand.u32 %v41, 4294901760
  %144 = vmatpush1.msra.mxu0 %v143
  %145 = vmatprep.subr.mxu0 0.0
  %v146 = vand.u32 %v42, 4294901760
  %147 = vmatpush1.msra.mxu0 %v146
  %148 = vmatprep.subr.mxu0 0.0
  %v149 = vand.u32 %v43, 4294901760
  %150 = vmatpush1.msra.mxu0 %v149
  %151 = vmatprep.subr.mxu0 0.0
  %v152 = vand.u32 %v44, 4294901760
  %153 = vmatpush1.msra.mxu0 %v152
  %154 = vmatprep.subr.mxu0 0.0
  %v155 = vand.u32 %v45, 4294901760
  %156 = vmatpush1.msra.mxu0 %v155
  %157 = vmatprep.subr.mxu0 0.0
  %v158 = vand.u32 %v46, 4294901760
  %159 = vmatpush1.msra.mxu0 %v158
  %160 = vmatprep.subr.mxu0 0.0
  %v161 = vand.u32 %v47, 4294901760
  %162 = vmatpush1.msra.mxu0 %v161
  %163 = vmatprep.subr.mxu0 0.0
  %v164 = vand.u32 %v48, 4294901760
  %165 = vmatpush1.msra.mxu0 %v164
  %v166 = vand.u32 %v15, 4294901760
  %v167 = vsub.f32 %v15, %v166
  %v168 = vand.u32 %v167, 4294901760
  %v169 = vsub.f32 %v167, %v168
  %v170 = vand.u32 %v169, 4294901760
  %171 = vmatprep.mubr.f32.mxu0 %v170
  %v172 = vand.u32 %v14, 4294901760
  %v173 = vsub.f32 %v14, %v172
  %v174 = vand.u32 %v173, 4294901760
  %v175 = vsub.f32 %v173, %v174
  %v176 = vand.u32 %v175, 4294901760
  %177 = vmatmul.mubr.f32.gmra.mrb[0].mxu0 %v176
  %v178 = vpop.f32.mrb[0].mxu0
  %v179 = vadd.f32 %v60, %v178
  %v180 = vpop.f32.mrb[0].mxu0
  %181 = vdwg.mxu0
  %182 = vmatprep.subr.mxu0 0.0
  %v183 = vand.u32 %v17, 4294901760
  %v184 = vsub.f32 %v17, %v183
  %v185 = vand.u32 %v184, 4294901760
  %v186 = vsub.f32 %v184, %v185
  %v187 = vand.u32 %v186, 4294901760
  %188 = vmatpush1.msra.mxu0 %v187
  %189 = vmatprep.subr.mxu0 0.0
  %v190 = vand.u32 %v18, 4294901760
  %v191 = vsub.f32 %v18, %v190
  %v192 = vand.u32 %v191, 4294901760
  %v193 = vsub.f32 %v191, %v192
  %v194 = vand.u32 %v193, 4294901760
  %195 = vmatpush1.msra.mxu0 %v194
  %196 = vmatprep.subr.mxu0 0.0
  %v197 = vand.u32 %v19, 4294901760
  %v198 = vsub.f32 %v19, %v197
  %v199 = vand.u32 %v198, 4294901760
  %v200 = vsub.f32 %v198, %v199
  %v201 = vand.u32 %v200, 4294901760
  %202 = vmatpush1.msra.mxu0 %v201
  %203 = vmatprep.subr.mxu0 0.0
  %v204 = vand.u32 %v20, 4294901760
  %v205 = vsub.f32 %v20, %v204
  %v206 = vand.u32 %v205, 4294901760
  %v207 = vsub.f32 %v205, %v206
  %v208 = vand.u32 %v207, 4294901760
  %209 = vmatpush1.msra.mxu0 %v208
  %210 = vmatprep.subr.mxu0 0.0
  %v211 = vand.u32 %v21, 4294901760
  %v212 = vsub.f32 %v21, %v211
  %v213 = vand.u32 %v212, 4294901760
  %v214 = vsub.f32 %v212, %v213
  %v215 = vand.u32 %v214, 4294901760
  %216 = vmatpush1.msra.mxu0 %v215
  %217 = vmatprep.subr.mxu0 0.0
  %v218 = vand.u32 %v22, 4294901760
  %v219 = vsub.f32 %v22, %v218
  %v220 = vand.u32 %v219, 4294901760
  %v221 = vsub.f32 %v219, %v220
  %v222 = vand.u32 %v221, 4294901760
  %223 = vmatpush1.msra.mxu0 %v222
  %224 = vmatprep.subr.mxu0 0.0
  %v225 = vand.u32 %v23, 4294901760
  %v226 = vsub.f32 %v23, %v225
  %v227 = vand.u32 %v226, 4294901760
  %v228 = vsub.f32 %v226, %v227
  %v229 = vand.u32 %v228, 4294901760
  %230 = vmatpush1.msra.mxu0 %v229
  %231 = vmatprep.subr.mxu0 0.0
  %v232 = vand.u32 %v24, 4294901760
  %v233 = vsub.f32 %v24, %v232
  %v234 = vand.u32 %v233, 4294901760
  %v235 = vsub.f32 %v233, %v234
  %v236 = vand.u32 %v235, 4294901760
  %237 = vmatpush1.msra.mxu0 %v236
  %238 = vmatprep.subr.mxu0 0.0
  %v239 = vand.u32 %v25, 4294901760
  %v240 = vsub.f32 %v25, %v239
  %v241 = vand.u32 %v240, 4294901760
  %v242 = vsub.f32 %v240, %v241
  %v243 = vand.u32 %v242, 4294901760
  %244 = vmatpush1.msra.mxu0 %v243
  %245 = vmatprep.subr.mxu0 0.0
  %v246 = vand.u32 %v26, 4294901760
  %v247 = vsub.f32 %v26, %v246
  %v248 = vand.u32 %v247, 4294901760
  %v249 = vsub.f32 %v247, %v248
  %v250 = vand.u32 %v249, 4294901760
  %251 = vmatpush1.msra.mxu0 %v250
  %252 = vmatprep.subr.mxu0 0.0
  %v253 = vand.u32 %v27, 4294901760
  %v254 = vsub.f32 %v27, %v253
  %v255 = vand.u32 %v254, 4294901760
  %v256 = vsub.f32 %v254, %v255
  %v257 = vand.u32 %v256, 4294901760
  %258 = vmatpush1.msra.mxu0 %v257
  %259 = vmatprep.subr.mxu0 0.0
  %v260 = vand.u32 %v28, 4294901760
  %v261 = vsub.f32 %v28, %v260
  %v262 = vand.u32 %v261, 4294901760
  %v263 = vsub.f32 %v261, %v262
  %v264 = vand.u32 %v263, 4294901760
  %265 = vmatpush1.msra.mxu0 %v264
  %266 = vmatprep.subr.mxu0 0.0
  %v267 = vand.u32 %v29, 4294901760
  %v268 = vsub.f32 %v29, %v267
  %v269 = vand.u32 %v268, 4294901760
  %v270 = vsub.f32 %v268, %v269
  %v271 = vand.u32 %v270, 4294901760
  %272 = vmatpush1.msra.mxu0 %v271
  %273 = vmatprep.subr.mxu0 0.0
  %v274 = vand.u32 %v30, 4294901760
  %v275 = vsub.f32 %v30, %v274
  %v276 = vand.u32 %v275, 4294901760
  %v277 = vsub.f32 %v275, %v276
  %v278 = vand.u32 %v277, 4294901760
  %279 = vmatpush1.msra.mxu0 %v278
  %280 = vmatprep.subr.mxu0 0.0
  %v281 = vand.u32 %v31, 4294901760
  %v282 = vsub.f32 %v31, %v281
  %v283 = vand.u32 %v282, 4294901760
  %v284 = vsub.f32 %v282, %v283
  %v285 = vand.u32 %v284, 4294901760
  %286 = vmatpush1.msra.mxu0 %v285
  %287 = vmatprep.subr.mxu0 0.0
  %v288 = vand.u32 %v32, 4294901760
  %v289 = vsub.f32 %v32, %v288
  %v290 = vand.u32 %v289, 4294901760
  %v291 = vsub.f32 %v289, %v290
  %v292 = vand.u32 %v291, 4294901760
  %293 = vmatpush1.msra.mxu0 %v292
  %294 = vmatprep.subr.mxu0 0.0
  %v295 = vand.u32 %v33, 4294901760
  %v296 = vsub.f32 %v33, %v295
  %v297 = vand.u32 %v296, 4294901760
  %v298 = vsub.f32 %v296, %v297
  %v299 = vand.u32 %v298, 4294901760
  %300 = vmatpush1.msra.mxu0 %v299
  %301 = vmatprep.subr.mxu0 0.0
  %v302 = vand.u32 %v34, 4294901760
  %v303 = vsub.f32 %v34, %v302
  %v304 = vand.u32 %v303, 4294901760
  %v305 = vsub.f32 %v303, %v304
  %v306 = vand.u32 %v305, 4294901760
  %307 = vmatpush1.msra.mxu0 %v306
  %308 = vmatprep.subr.mxu0 0.0
  %v309 = vand.u32 %v35, 4294901760
  %v310 = vsub.f32 %v35, %v309
  %v311 = vand.u32 %v310, 4294901760
  %v312 = vsub.f32 %v310, %v311
  %v313 = vand.u32 %v312, 4294901760
  %314 = vmatpush1.msra.mxu0 %v313
  %315 = vmatprep.subr.mxu0 0.0
  %v316 = vand.u32 %v36, 4294901760
  %v317 = vsub.f32 %v36, %v316
  %v318 = vand.u32 %v317, 4294901760
  %v319 = vsub.f32 %v317, %v318
  %v320 = vand.u32 %v319, 4294901760
  %321 = vmatpush1.msra.mxu0 %v320
  %322 = vmatprep.subr.mxu0 0.0
  %v323 = vand.u32 %v37, 4294901760
  %v324 = vsub.f32 %v37, %v323
  %v325 = vand.u32 %v324, 4294901760
  %v326 = vsub.f32 %v324, %v325
  %v327 = vand.u32 %v326, 4294901760
  %328 = vmatpush1.msra.mxu0 %v327
  %329 = vmatprep.subr.mxu0 0.0
  %v330 = vand.u32 %v38, 4294901760
  %v331 = vsub.f32 %v38, %v330
  %v332 = vand.u32 %v331, 4294901760
  %v333 = vsub.f32 %v331, %v332
  %v334 = vand.u32 %v333, 4294901760
  %335 = vmatpush1.msra.mxu0 %v334
  %336 = vmatprep.subr.mxu0 0.0
  %v337 = vand.u32 %v39, 4294901760
  %v338 = vsub.f32 %v39, %v337
  %v339 = vand.u32 %v338, 4294901760
  %v340 = vsub.f32 %v338, %v339
  %v341 = vand.u32 %v340, 4294901760
  %342 = vmatpush1.msra.mxu0 %v341
  %343 = vmatprep.subr.mxu0 0.0
  %v344 = vand.u32 %v40, 4294901760
  %v345 = vsub.f32 %v40, %v344
  %v346 = vand.u32 %v345, 4294901760
  %v347 = vsub.f32 %v345, %v346
  %v348 = vand.u32 %v347, 4294901760
  %349 = vmatpush1.msra.mxu0 %v348
  %350 = vmatprep.subr.mxu0 0.0
  %v351 = vand.u32 %v41, 4294901760
  %v352 = vsub.f32 %v41, %v351
  %v353 = vand.u32 %v352, 4294901760
  %v354 = vsub.f32 %v352, %v353
  %v355 = vand.u32 %v354, 4294901760
  %356 = vmatpush1.msra.mxu0 %v355
  %357 = vmatprep.subr.mxu0 0.0
  %v358 = vand.u32 %v42, 4294901760
  %v359 = vsub.f32 %v42, %v358
  %v360 = vand.u32 %v359, 4294901760
  %v361 = vsub.f32 %v359, %v360
  %v362 = vand.u32 %v361, 4294901760
  %363 = vmatpush1.msra.mxu0 %v362
  %364 = vmatprep.subr.mxu0 0.0
  %v365 = vand.u32 %v43, 4294901760
  %v366 = vsub.f32 %v43, %v365
  %v367 = vand.u32 %v366, 4294901760
  %v368 = vsub.f32 %v366, %v367
  %v369 = vand.u32 %v368, 4294901760
  %370 = vmatpush1.msra.mxu0 %v369
  %371 = vmatprep.subr.mxu0 0.0
  %v372 = vand.u32 %v44, 4294901760
  %v373 = vsub.f32 %v44, %v372
  %v374 = vand.u32 %v373, 4294901760
  %v375 = vsub.f32 %v373, %v374
  %v376 = vand.u32 %v375, 4294901760
  %377 = vmatpush1.msra.mxu0 %v376
  %378 = vmatprep.subr.mxu0 0.0
  %v379 = vand.u32 %v45, 4294901760
  %v380 = vsub.f32 %v45, %v379
  %v381 = vand.u32 %v380, 4294901760
  %v382 = vsub.f32 %v380, %v381
  %v383 = vand.u32 %v382, 4294901760
  %384 = vmatpush1.msra.mxu0 %v383
  %385 = vmatprep.subr.mxu0 0.0
  %v386 = vand.u32 %v46, 4294901760
  %v387 = vsub.f32 %v46, %v386
  %v388 = vand.u32 %v387, 4294901760
  %v389 = vsub.f32 %v387, %v388
  %v390 = vand.u32 %v389, 4294901760
  %391 = vmatpush1.msra.mxu0 %v390
  %392 = vmatprep.subr.mxu0 0.0
  %v393 = vand.u32 %v47, 4294901760
  %v394 = vsub.f32 %v47, %v393
  %v395 = vand.u32 %v394, 4294901760
  %v396 = vsub.f32 %v394, %v395
  %v397 = vand.u32 %v396, 4294901760
  %398 = vmatpush1.msra.mxu0 %v397
  %399 = vmatprep.subr.mxu0 0.0
  %v400 = vand.u32 %v48, 4294901760
  %v401 = vsub.f32 %v48, %v400
  %v402 = vand.u32 %v401, 4294901760
  %v403 = vsub.f32 %v401, %v402
  %v404 = vand.u32 %v403, 4294901760
  %405 = vmatpush1.msra.mxu0 %v404
  %v406 = vand.u32 %v15, 4294901760
  %407 = vmatprep.mubr.f32.mxu0 %v406
  %v408 = vand.u32 %v14, 4294901760
  %409 = vmatmul.mubr.f32.gmra.mrb[0].mxu0 %v408
  %v410 = vpop.f32.mrb[0].mxu0
  %v411 = vadd.f32 %v179, %v410
  %v412 = vpop.f32.mrb[0].mxu0
  %413 = vdwg.mxu0
  %414 = vmatprep.subr.mxu0 0.0
  %v415 = vand.u32 %v17, 4294901760
  %v416 = vsub.f32 %v17, %v415
  %417 = vmatpush1.msra.mxu0 %v416
  %418 = vmatprep.subr.mxu0 0.0
  %v419 = vand.u32 %v18, 4294901760
  %v420 = vsub.f32 %v18, %v419
  %421 = vmatpush1.msra.mxu0 %v420
  %422 = vmatprep.subr.mxu0 0.0
  %v423 = vand.u32 %v19, 4294901760
  %v424 = vsub.f32 %v19, %v423
  %425 = vmatpush1.msra.mxu0 %v424
  %426 = vmatprep.subr.mxu0 0.0
  %v427 = vand.u32 %v20, 4294901760
  %v428 = vsub.f32 %v20, %v427
  %429 = vmatpush1.msra.mxu0 %v428
  %430 = vmatprep.subr.mxu0 0.0
  %v431 = vand.u32 %v21, 4294901760
  %v432 = vsub.f32 %v21, %v431
  %433 = vmatpush1.msra.mxu0 %v432
  %434 = vmatprep.subr.mxu0 0.0
  %v435 = vand.u32 %v22, 4294901760
  %v436 = vsub.f32 %v22, %v435
  %437 = vmatpush1.msra.mxu0 %v436
  %438 = vmatprep.subr.mxu0 0.0
  %v439 = vand.u32 %v23, 4294901760
  %v440 = vsub.f32 %v23, %v439
  %441 = vmatpush1.msra.mxu0 %v440
  %442 = vmatprep.subr.mxu0 0.0
  %v443 = vand.u32 %v24, 4294901760
  %v444 = vsub.f32 %v24, %v443
  %445 = vmatpush1.msra.mxu0 %v444
  %446 = vmatprep.subr.mxu0 0.0
  %v447 = vand.u32 %v25, 4294901760
  %v448 = vsub.f32 %v25, %v447
  %449 = vmatpush1.msra.mxu0 %v448
  %450 = vmatprep.subr.mxu0 0.0
  %v451 = vand.u32 %v26, 4294901760
  %v452 = vsub.f32 %v26, %v451
  %453 = vmatpush1.msra.mxu0 %v452
  %454 = vmatprep.subr.mxu0 0.0
  %v455 = vand.u32 %v27, 4294901760
  %v456 = vsub.f32 %v27, %v455
  %457 = vmatpush1.msra.mxu0 %v456
  %458 = vmatprep.subr.mxu0 0.0
  %v459 = vand.u32 %v28, 4294901760
  %v460 = vsub.f32 %v28, %v459
  %461 = vmatpush1.msra.mxu0 %v460
  %462 = vmatprep.subr.mxu0 0.0
  %v463 = vand.u32 %v29, 4294901760
  %v464 = vsub.f32 %v29, %v463
  %465 = vmatpush1.msra.mxu0 %v464
  %466 = vmatprep.subr.mxu0 0.0
  %v467 = vand.u32 %v30, 4294901760
  %v468 = vsub.f32 %v30, %v467
  %469 = vmatpush1.msra.mxu0 %v468
  %470 = vmatprep.subr.mxu0 0.0
  %v471 = vand.u32 %v31, 4294901760
  %v472 = vsub.f32 %v31, %v471
  %473 = vmatpush1.msra.mxu0 %v472
  %474 = vmatprep.subr.mxu0 0.0
  %v475 = vand.u32 %v32, 4294901760
  %v476 = vsub.f32 %v32, %v475
  %477 = vmatpush1.msra.mxu0 %v476
  %478 = vmatprep.subr.mxu0 0.0
  %v479 = vand.u32 %v33, 4294901760
  %v480 = vsub.f32 %v33, %v479
  %481 = vmatpush1.msra.mxu0 %v480
  %482 = vmatprep.subr.mxu0 0.0
  %v483 = vand.u32 %v34, 4294901760
  %v484 = vsub.f32 %v34, %v483
  %485 = vmatpush1.msra.mxu0 %v484
  %486 = vmatprep.subr.mxu0 0.0
  %v487 = vand.u32 %v35, 4294901760
  %v488 = vsub.f32 %v35, %v487
  %489 = vmatpush1.msra.mxu0 %v488
  %490 = vmatprep.subr.mxu0 0.0
  %v491 = vand.u32 %v36, 4294901760
  %v492 = vsub.f32 %v36, %v491
  %493 = vmatpush1.msra.mxu0 %v492
  %494 = vmatprep.subr.mxu0 0.0
  %v495 = vand.u32 %v37, 4294901760
  %v496 = vsub.f32 %v37, %v495
  %497 = vmatpush1.msra.mxu0 %v496
  %498 = vmatprep.subr.mxu0 0.0
  %v499 = vand.u32 %v38, 4294901760
  %v500 = vsub.f32 %v38, %v499
  %501 = vmatpush1.msra.mxu0 %v500
  %502 = vmatprep.subr.mxu0 0.0
  %v503 = vand.u32 %v39, 4294901760
  %v504 = vsub.f32 %v39, %v503
  %505 = vmatpush1.msra.mxu0 %v504
  %506 = vmatprep.subr.mxu0 0.0
  %v507 = vand.u32 %v40, 4294901760
  %v508 = vsub.f32 %v40, %v507
  %509 = vmatpush1.msra.mxu0 %v508
  %510 = vmatprep.subr.mxu0 0.0
  %v511 = vand.u32 %v41, 4294901760
  %v512 = vsub.f32 %v41, %v511
  %513 = vmatpush1.msra.mxu0 %v512
  %514 = vmatprep.subr.mxu0 0.0
  %v515 = vand.u32 %v42, 4294901760
  %v516 = vsub.f32 %v42, %v515
  %517 = vmatpush1.msra.mxu0 %v516
  %518 = vmatprep.subr.mxu0 0.0
  %v519 = vand.u32 %v43, 4294901760
  %v520 = vsub.f32 %v43, %v519
  %521 = vmatpush1.msra.mxu0 %v520
  %522 = vmatprep.subr.mxu0 0.0
  %v523 = vand.u32 %v44, 4294901760
  %v524 = vsub.f32 %v44, %v523
  %525 = vmatpush1.msra.mxu0 %v524
  %526 = vmatprep.subr.mxu0 0.0
  %v527 = vand.u32 %v45, 4294901760
  %v528 = vsub.f32 %v45, %v527
  %529 = vmatpush1.msra.mxu0 %v528
  %530 = vmatprep.subr.mxu0 0.0
  %v531 = vand.u32 %v46, 4294901760
  %v532 = vsub.f32 %v46, %v531
  %533 = vmatpush1.msra.mxu0 %v532
  %534 = vmatprep.subr.mxu0 0.0
  %v535 = vand.u32 %v47, 4294901760
  %v536 = vsub.f32 %v47, %v535
  %537 = vmatpush1.msra.mxu0 %v536
  %538 = vmatprep.subr.mxu0 0.0
  %v539 = vand.u32 %v48, 4294901760
  %v540 = vsub.f32 %v48, %v539
  %541 = vmatpush1.msra.mxu0 %v540
  %v542 = vand.u32 %v15, 4294901760
  %v543 = vsub.f32 %v15, %v542
  %544 = vmatprep.mubr.f32.mxu0 %v543
  %v545 = vand.u32 %v14, 4294901760
  %v546 = vsub.f32 %v14, %v545
  %547 = vmatmul.mubr.f32.gmra.mrb[0].mxu0 %v546
  %v548 = vpop.f32.mrb[0].mxu0
  %v549 = vadd.f32 %v411, %v548
  %v550 = vpop.f32.mrb[0].mxu0
  %551 = vdwg.mxu0
  %552 = vmatprep.subr.mxu0 0.0
  %v553 = vand.u32 %v17, 4294901760
  %554 = vmatpush1.msra.mxu0 %v553
  %555 = vmatprep.subr.mxu0 0.0
  %v556 = vand.u32 %v18, 4294901760
  %557 = vmatpush1.msra.mxu0 %v556
  %558 = vmatprep.subr.mxu0 0.0
  %v559 = vand.u32 %v19, 4294901760
  %560 = vmatpush1.msra.mxu0 %v559
  %561 = vmatprep.subr.mxu0 0.0
  %v562 = vand.u32 %v20, 4294901760
  %563 = vmatpush1.msra.mxu0 %v562
  %564 = vmatprep.subr.mxu0 0.0
  %v565 = vand.u32 %v21, 4294901760
  %566 = vmatpush1.msra.mxu0 %v565
  %567 = vmatprep.subr.mxu0 0.0
  %v568 = vand.u32 %v22, 4294901760
  %569 = vmatpush1.msra.mxu0 %v568
  %570 = vmatprep.subr.mxu0 0.0
  %v571 = vand.u32 %v23, 4294901760
  %572 = vmatpush1.msra.mxu0 %v571
  %573 = vmatprep.subr.mxu0 0.0
  %v574 = vand.u32 %v24, 4294901760
  %575 = vmatpush1.msra.mxu0 %v574
  %576 = vmatprep.subr.mxu0 0.0
  %v577 = vand.u32 %v25, 4294901760
  %578 = vmatpush1.msra.mxu0 %v577
  %579 = vmatprep.subr.mxu0 0.0
  %v580 = vand.u32 %v26, 4294901760
  %581 = vmatpush1.msra.mxu0 %v580
  %582 = vmatprep.subr.mxu0 0.0
  %v583 = vand.u32 %v27, 4294901760
  %584 = vmatpush1.msra.mxu0 %v583
  %585 = vmatprep.subr.mxu0 0.0
  %v586 = vand.u32 %v28, 4294901760
  %587 = vmatpush1.msra.mxu0 %v586
  %588 = vmatprep.subr.mxu0 0.0
  %v589 = vand.u32 %v29, 4294901760
  %590 = vmatpush1.msra.mxu0 %v589
  %591 = vmatprep.subr.mxu0 0.0
  %v592 = vand.u32 %v30, 4294901760
  %593 = vmatpush1.msra.mxu0 %v592
  %594 = vmatprep.subr.mxu0 0.0
  %v595 = vand.u32 %v31, 4294901760
  %596 = vmatpush1.msra.mxu0 %v595
  %597 = vmatprep.subr.mxu0 0.0
  %v598 = vand.u32 %v32, 4294901760
  %599 = vmatpush1.msra.mxu0 %v598
  %600 = vmatprep.subr.mxu0 0.0
  %v601 = vand.u32 %v33, 4294901760
  %602 = vmatpush1.msra.mxu0 %v601
  %603 = vmatprep.subr.mxu0 0.0
  %v604 = vand.u32 %v34, 4294901760
  %605 = vmatpush1.msra.mxu0 %v604
  %606 = vmatprep.subr.mxu0 0.0
  %v607 = vand.u32 %v35, 4294901760
  %608 = vmatpush1.msra.mxu0 %v607
  %609 = vmatprep.subr.mxu0 0.0
  %v610 = vand.u32 %v36, 4294901760
  %611 = vmatpush1.msra.mxu0 %v610
  %612 = vmatprep.subr.mxu0 0.0
  %v613 = vand.u32 %v37, 4294901760
  %614 = vmatpush1.msra.mxu0 %v613
  %615 = vmatprep.subr.mxu0 0.0
  %v616 = vand.u32 %v38, 4294901760
  %617 = vmatpush1.msra.mxu0 %v616
  %618 = vmatprep.subr.mxu0 0.0
  %v619 = vand.u32 %v39, 4294901760
  %620 = vmatpush1.msra.mxu0 %v619
  %621 = vmatprep.subr.mxu0 0.0
  %v622 = vand.u32 %v40, 4294901760
  %623 = vmatpush1.msra.mxu0 %v622
  %624 = vmatprep.subr.mxu0 0.0
  %v625 = vand.u32 %v41, 4294901760
  %626 = vmatpush1.msra.mxu0 %v625
  %627 = vmatprep.subr.mxu0 0.0
  %v628 = vand.u32 %v42, 4294901760
  %629 = vmatpush1.msra.mxu0 %v628
  %630 = vmatprep.subr.mxu0 0.0
  %v631 = vand.u32 %v43, 4294901760
  %632 = vmatpush1.msra.mxu0 %v631
  %633 = vmatprep.subr.mxu0 0.0
  %v634 = vand.u32 %v44, 4294901760
  %635 = vmatpush1.msra.mxu0 %v634
  %636 = vmatprep.subr.mxu0 0.0
  %v637 = vand.u32 %v45, 4294901760
  %638 = vmatpush1.msra.mxu0 %v637
  %639 = vmatprep.subr.mxu0 0.0
  %v640 = vand.u32 %v46, 4294901760
  %641 = vmatpush1.msra.mxu0 %v640
  %642 = vmatprep.subr.mxu0 0.0
  %v643 = vand.u32 %v47, 4294901760
  %644 = vmatpush1.msra.mxu0 %v643
  %645 = vmatprep.subr.mxu0 0.0
  %v646 = vand.u32 %v48, 4294901760
  %647 = vmatpush1.msra.mxu0 %v646
  %v648 = vand.u32 %v15, 4294901760
  %v649 = vsub.f32 %v15, %v648
  %v650 = vand.u32 %v649, 4294901760
  %651 = vmatprep.mubr.f32.mxu0 %v650
  %v652 = vand.u32 %v14, 4294901760
  %v653 = vsub.f32 %v14, %v652
  %v654 = vand.u32 %v653, 4294901760
  %655 = vmatmul.mubr.f32.gmra.mrb[0].mxu0 %v654
  %v656 = vpop.f32.mrb[0].mxu0
  %v657 = vadd.f32 %v549, %v656
  %v658 = vpop.f32.mrb[0].mxu0
  %659 = vdwg.mxu0
  %660 = vmatprep.subr.mxu0 0.0
  %v661 = vand.u32 %v17, 4294901760
  %v662 = vsub.f32 %v17, %v661
  %v663 = vand.u32 %v662, 4294901760
  %664 = vmatpush1.msra.mxu0 %v663
  %665 = vmatprep.subr.mxu0 0.0
  %v666 = vand.u32 %v18, 4294901760
  %v667 = vsub.f32 %v18, %v666
  %v668 = vand.u32 %v667, 4294901760
  %669 = vmatpush1.msra.mxu0 %v668
  %670 = vmatprep.subr.mxu0 0.0
  %v671 = vand.u32 %v19, 4294901760
  %v672 = vsub.f32 %v19, %v671
  %v673 = vand.u32 %v672, 4294901760
  %674 = vmatpush1.msra.mxu0 %v673
  %675 = vmatprep.subr.mxu0 0.0
  %v676 = vand.u32 %v20, 4294901760
  %v677 = vsub.f32 %v20, %v676
  %v678 = vand.u32 %v677, 4294901760
  %679 = vmatpush1.msra.mxu0 %v678
  %680 = vmatprep.subr.mxu0 0.0
  %v681 = vand.u32 %v21, 4294901760
  %v682 = vsub.f32 %v21, %v681
  %v683 = vand.u32 %v682, 4294901760
  %684 = vmatpush1.msra.mxu0 %v683
  %685 = vmatprep.subr.mxu0 0.0
  %v686 = vand.u32 %v22, 4294901760
  %v687 = vsub.f32 %v22, %v686
  %v688 = vand.u32 %v687, 4294901760
  %689 = vmatpush1.msra.mxu0 %v688
  %690 = vmatprep.subr.mxu0 0.0
  %v691 = vand.u32 %v23, 4294901760
  %v692 = vsub.f32 %v23, %v691
  %v693 = vand.u32 %v692, 4294901760
  %694 = vmatpush1.msra.mxu0 %v693
  %695 = vmatprep.subr.mxu0 0.0
  %v696 = vand.u32 %v24, 4294901760
  %v697 = vsub.f32 %v24, %v696
  %v698 = vand.u32 %v697, 4294901760
  %699 = vmatpush1.msra.mxu0 %v698
  %700 = vmatprep.subr.mxu0 0.0
  %v701 = vand.u32 %v25, 4294901760
  %v702 = vsub.f32 %v25, %v701
  %v703 = vand.u32 %v702, 4294901760
  %704 = vmatpush1.msra.mxu0 %v703
  %705 = vmatprep.subr.mxu0 0.0
  %v706 = vand.u32 %v26, 4294901760
  %v707 = vsub.f32 %v26, %v706
  %v708 = vand.u32 %v707, 4294901760
  %709 = vmatpush1.msra.mxu0 %v708
  %710 = vmatprep.subr.mxu0 0.0
  %v711 = vand.u32 %v27, 4294901760
  %v712 = vsub.f32 %v27, %v711
  %v713 = vand.u32 %v712, 4294901760
  %714 = vmatpush1.msra.mxu0 %v713
  %715 = vmatprep.subr.mxu0 0.0
  %v716 = vand.u32 %v28, 4294901760
  %v717 = vsub.f32 %v28, %v716
  %v718 = vand.u32 %v717, 4294901760
  %719 = vmatpush1.msra.mxu0 %v718
  %720 = vmatprep.subr.mxu0 0.0
  %v721 = vand.u32 %v29, 4294901760
  %v722 = vsub.f32 %v29, %v721
  %v723 = vand.u32 %v722, 4294901760
  %724 = vmatpush1.msra.mxu0 %v723
  %725 = vmatprep.subr.mxu0 0.0
  %v726 = vand.u32 %v30, 4294901760
  %v727 = vsub.f32 %v30, %v726
  %v728 = vand.u32 %v727, 4294901760
  %729 = vmatpush1.msra.mxu0 %v728
  %730 = vmatprep.subr.mxu0 0.0
  %v731 = vand.u32 %v31, 4294901760
  %v732 = vsub.f32 %v31, %v731
  %v733 = vand.u32 %v732, 4294901760
  %734 = vmatpush1.msra.mxu0 %v733
  %735 = vmatprep.subr.mxu0 0.0
  %v736 = vand.u32 %v32, 4294901760
  %v737 = vsub.f32 %v32, %v736
  %v738 = vand.u32 %v737, 4294901760
  %739 = vmatpush1.msra.mxu0 %v738
  %740 = vmatprep.subr.mxu0 0.0
  %v741 = vand.u32 %v33, 4294901760
  %v742 = vsub.f32 %v33, %v741
  %v743 = vand.u32 %v742, 4294901760
  %744 = vmatpush1.msra.mxu0 %v743
  %745 = vmatprep.subr.mxu0 0.0
  %v746 = vand.u32 %v34, 4294901760
  %v747 = vsub.f32 %v34, %v746
  %v748 = vand.u32 %v747, 4294901760
  %749 = vmatpush1.msra.mxu0 %v748
  %750 = vmatprep.subr.mxu0 0.0
  %v751 = vand.u32 %v35, 4294901760
  %v752 = vsub.f32 %v35, %v751
  %v753 = vand.u32 %v752, 4294901760
  %754 = vmatpush1.msra.mxu0 %v753
  %755 = vmatprep.subr.mxu0 0.0
  %v756 = vand.u32 %v36, 4294901760
  %v757 = vsub.f32 %v36, %v756
  %v758 = vand.u32 %v757, 4294901760
  %759 = vmatpush1.msra.mxu0 %v758
  %760 = vmatprep.subr.mxu0 0.0
  %v761 = vand.u32 %v37, 4294901760
  %v762 = vsub.f32 %v37, %v761
  %v763 = vand.u32 %v762, 4294901760
  %764 = vmatpush1.msra.mxu0 %v763
  %765 = vmatprep.subr.mxu0 0.0
  %v766 = vand.u32 %v38, 4294901760
  %v767 = vsub.f32 %v38, %v766
  %v768 = vand.u32 %v767, 4294901760
  %769 = vmatpush1.msra.mxu0 %v768
  %770 = vmatprep.subr.mxu0 0.0
  %v771 = vand.u32 %v39, 4294901760
  %v772 = vsub.f32 %v39, %v771
  %v773 = vand.u32 %v772, 4294901760
  %774 = vmatpush1.msra.mxu0 %v773
  %775 = vmatprep.subr.mxu0 0.0
  %v776 = vand.u32 %v40, 4294901760
  %v777 = vsub.f32 %v40, %v776
  %v778 = vand.u32 %v777, 4294901760
  %779 = vmatpush1.msra.mxu0 %v778
  %780 = vmatprep.subr.mxu0 0.0
  %v781 = vand.u32 %v41, 4294901760
  %v782 = vsub.f32 %v41, %v781
  %v783 = vand.u32 %v782, 4294901760
  %784 = vmatpush1.msra.mxu0 %v783
  %785 = vmatprep.subr.mxu0 0.0
  %v786 = vand.u32 %v42, 4294901760
  %v787 = vsub.f32 %v42, %v786
  %v788 = vand.u32 %v787, 4294901760
  %789 = vmatpush1.msra.mxu0 %v788
  %790 = vmatprep.subr.mxu0 0.0
  %v791 = vand.u32 %v43, 4294901760
  %v792 = vsub.f32 %v43, %v791
  %v793 = vand.u32 %v792, 4294901760
  %794 = vmatpush1.msra.mxu0 %v793
  %795 = vmatprep.subr.mxu0 0.0
  %v796 = vand.u32 %v44, 4294901760
  %v797 = vsub.f32 %v44, %v796
  %v798 = vand.u32 %v797, 4294901760
  %799 = vmatpush1.msra.mxu0 %v798
  %800 = vmatprep.subr.mxu0 0.0
  %v801 = vand.u32 %v45, 4294901760
  %v802 = vsub.f32 %v45, %v801
  %v803 = vand.u32 %v802, 4294901760
  %804 = vmatpush1.msra.mxu0 %v803
  %805 = vmatprep.subr.mxu0 0.0
  %v806 = vand.u32 %v46, 4294901760
  %v807 = vsub.f32 %v46, %v806
  %v808 = vand.u32 %v807, 4294901760
  %809 = vmatpush1.msra.mxu0 %v808
  %810 = vmatprep.subr.mxu0 0.0
  %v811 = vand.u32 %v47, 4294901760
  %v812 = vsub.f32 %v47, %v811
  %v813 = vand.u32 %v812, 4294901760
  %814 = vmatpush1.msra.mxu0 %v813
  %815 = vmatprep.subr.mxu0 0.0
  %v816 = vand.u32 %v48, 4294901760
  %v817 = vsub.f32 %v48, %v816
  %v818 = vand.u32 %v817, 4294901760
  %819 = vmatpush1.msra.mxu0 %v818
  %v820 = vand.u32 %v15, 4294901760
  %821 = vmatprep.mubr.f32.mxu0 %v820
  %v822 = vand.u32 %v14, 4294901760
  %823 = vmatmul.mubr.f32.gmra.mrb[0].mxu0 %v822
  %v824 = vpop.f32.mrb[0].mxu0
  %v825 = vadd.f32 %v657, %v824
  %v826 = vpop.f32.mrb[0].mxu0
  %827 = vdwg.mxu0
  %828 = vmatprep.subr.mxu0 0.0
  %v829 = vand.u32 %v17, 4294901760
  %830 = vmatpush1.msra.mxu0 %v829
  %831 = vmatprep.subr.mxu0 0.0
  %v832 = vand.u32 %v18, 4294901760
  %833 = vmatpush1.msra.mxu0 %v832
  %834 = vmatprep.subr.mxu0 0.0
  %v835 = vand.u32 %v19, 4294901760
  %836 = vmatpush1.msra.mxu0 %v835
  %837 = vmatprep.subr.mxu0 0.0
  %v838 = vand.u32 %v20, 4294901760
  %839 = vmatpush1.msra.mxu0 %v838
  %840 = vmatprep.subr.mxu0 0.0
  %v841 = vand.u32 %v21, 4294901760
  %842 = vmatpush1.msra.mxu0 %v841
  %843 = vmatprep.subr.mxu0 0.0
  %v844 = vand.u32 %v22, 4294901760
  %845 = vmatpush1.msra.mxu0 %v844
  %846 = vmatprep.subr.mxu0 0.0
  %v847 = vand.u32 %v23, 4294901760
  %848 = vmatpush1.msra.mxu0 %v847
  %849 = vmatprep.subr.mxu0 0.0
  %v850 = vand.u32 %v24, 4294901760
  %851 = vmatpush1.msra.mxu0 %v850
  %852 = vmatprep.subr.mxu0 0.0
  %v853 = vand.u32 %v25, 4294901760
  %854 = vmatpush1.msra.mxu0 %v853
  %855 = vmatprep.subr.mxu0 0.0
  %v856 = vand.u32 %v26, 4294901760
  %857 = vmatpush1.msra.mxu0 %v856
  %858 = vmatprep.subr.mxu0 0.0
  %v859 = vand.u32 %v27, 4294901760
  %860 = vmatpush1.msra.mxu0 %v859
  %861 = vmatprep.subr.mxu0 0.0
  %v862 = vand.u32 %v28, 4294901760
  %863 = vmatpush1.msra.mxu0 %v862
  %864 = vmatprep.subr.mxu0 0.0
  %v865 = vand.u32 %v29, 4294901760
  %866 = vmatpush1.msra.mxu0 %v865
  %867 = vmatprep.subr.mxu0 0.0
  %v868 = vand.u32 %v30, 4294901760
  %869 = vmatpush1.msra.mxu0 %v868
  %870 = vmatprep.subr.mxu0 0.0
  %v871 = vand.u32 %v31, 4294901760
  %872 = vmatpush1.msra.mxu0 %v871
  %873 = vmatprep.subr.mxu0 0.0
  %v874 = vand.u32 %v32, 4294901760
  %875 = vmatpush1.msra.mxu0 %v874
  %876 = vmatprep.subr.mxu0 0.0
  %v877 = vand.u32 %v33, 4294901760
  %878 = vmatpush1.msra.mxu0 %v877
  %879 = vmatprep.subr.mxu0 0.0
  %v880 = vand.u32 %v34, 4294901760
  %881 = vmatpush1.msra.mxu0 %v880
  %882 = vmatprep.subr.mxu0 0.0
  %v883 = vand.u32 %v35, 4294901760
  %884 = vmatpush1.msra.mxu0 %v883
  %885 = vmatprep.subr.mxu0 0.0
  %v886 = vand.u32 %v36, 4294901760
  %887 = vmatpush1.msra.mxu0 %v886
  %888 = vmatprep.subr.mxu0 0.0
  %v889 = vand.u32 %v37, 4294901760
  %890 = vmatpush1.msra.mxu0 %v889
  %891 = vmatprep.subr.mxu0 0.0
  %v892 = vand.u32 %v38, 4294901760
  %893 = vmatpush1.msra.mxu0 %v892
  %894 = vmatprep.subr.mxu0 0.0
  %v895 = vand.u32 %v39, 4294901760
  %896 = vmatpush1.msra.mxu0 %v895
  %897 = vmatprep.subr.mxu0 0.0
  %v898 = vand.u32 %v40, 4294901760
  %899 = vmatpush1.msra.mxu0 %v898
  %900 = vmatprep.subr.mxu0 0.0
  %v901 = vand.u32 %v41, 4294901760
  %902 = vmatpush1.msra.mxu0 %v901
  %903 = vmatprep.subr.mxu0 0.0
  %v904 = vand.u32 %v42, 4294901760
  %905 = vmatpush1.msra.mxu0 %v904
  %906 = vmatprep.subr.mxu0 0.0
  %v907 = vand.u32 %v43, 4294901760
  %908 = vmatpush1.msra.mxu0 %v907
  %909 = vmatprep.subr.mxu0 0.0
  %v910 = vand.u32 %v44, 4294901760
  %911 = vmatpush1.msra.mxu0 %v910
  %912 = vmatprep.subr.mxu0 0.0
  %v913 = vand.u32 %v45, 4294901760
  %914 = vmatpush1.msra.mxu0 %v913
  %915 = vmatprep.subr.mxu0 0.0
  %v916 = vand.u32 %v46, 4294901760
  %917 = vmatpush1.msra.mxu0 %v916
  %918 = vmatprep.subr.mxu0 0.0
  %v919 = vand.u32 %v47, 4294901760
  %920 = vmatpush1.msra.mxu0 %v919
  %921 = vmatprep.subr.mxu0 0.0
  %v922 = vand.u32 %v48, 4294901760
  %923 = vmatpush1.msra.mxu0 %v922
  %v924 = vand.u32 %v15, 4294901760
  %925 = vmatprep.mubr.f32.mxu0 %v924
  %v926 = vand.u32 %v14, 4294901760
  %927 = vmatmul.mubr.f32.gmra.mrb[0].mxu0 %v926
  %v928 = vpop.f32.mrb[0].mxu0
  %v929 = vadd.f32 %v825, %v928
  %v930 = vpop.f32.mrb[0].mxu0
  %931 = vdwg.mxu0
  %932 = vmatprep.subr.mxu0 0.0
  %v933 = vand.u32 %v49, 4294901760
  %934 = vmatpush1.msra.mxu0 %v933
  %935 = vmatprep.subr.mxu0 0.0
  %v936 = vand.u32 %v50, 4294901760
  %937 = vmatpush1.msra.mxu0 %v936
  %938 = vmatprep.subr.mxu0 0.0
  %v939 = vand.u32 %v51, 4294901760
  %940 = vmatpush1.msra.mxu0 %v939
  %941 = vmatprep.subr.mxu0 0.0
  %v942 = vand.u32 %v52, 4294901760
  %943 = vmatpush1.msra.mxu0 %v942
  %944 = vmatprep.subr.mxu0 0.0
  %v945 = vand.u32 %v53, 4294901760
  %946 = vmatpush1.msra.mxu0 %v945
  %947 = vmatprep.subr.mxu0 0.0
  %v948 = vand.u32 %v68, 4294901760
  %949 = vmatpush1.msra.mxu0 %v948
  %950 = vmatprep.subr.mxu0 0.0
  %951 = vmatpush1.msra.mxu0 0.0
  %952 = vmatprep.subr.mxu0 0.0
  %953 = vmatpush1.msra.mxu0 0.0
  %954 = vmatprep.subr.mxu0 0.0
  %955 = vmatpush1.msra.mxu0 0.0
  %956 = vmatprep.subr.mxu0 0.0
  %957 = vmatpush1.msra.mxu0 0.0
  %958 = vmatprep.subr.mxu0 0.0
  %959 = vmatpush1.msra.mxu0 0.0
  %960 = vmatprep.subr.mxu0 0.0
  %961 = vmatpush1.msra.mxu0 0.0
  %962 = vmatprep.subr.mxu0 0.0
  %963 = vmatpush1.msra.mxu0 0.0
  %964 = vmatprep.subr.mxu0 0.0
  %965 = vmatpush1.msra.mxu0 0.0
  %966 = vmatprep.subr.mxu0 0.0
  %967 = vmatpush1.msra.mxu0 0.0
  %968 = vmatprep.subr.mxu0 0.0
  %969 = vmatpush1.msra.mxu0 0.0
  %970 = vmatprep.subr.mxu0 0.0
  %971 = vmatpush1.msra.mxu0 0.0
  %972 = vmatprep.subr.mxu0 0.0
  %973 = vmatpush1.msra.mxu0 0.0
  %974 = vmatprep.subr.mxu0 0.0
  %975 = vmatpush1.msra.mxu0 0.0
  %976 = vmatprep.subr.mxu0 0.0
  %977 = vmatpush1.msra.mxu0 0.0
  %978 = vmatprep.subr.mxu0 0.0
  %979 = vmatpush1.msra.mxu0 0.0
  %980 = vmatprep.subr.mxu0 0.0
  %981 = vmatpush1.msra.mxu0 0.0
  %982 = vmatprep.subr.mxu0 0.0
  %983 = vmatpush1.msra.mxu0 0.0
  %984 = vmatprep.subr.mxu0 0.0
  %985 = vmatpush1.msra.mxu0 0.0
  %986 = vmatprep.subr.mxu0 0.0
  %987 = vmatpush1.msra.mxu0 0.0
  %988 = vmatprep.subr.mxu0 0.0
  %989 = vmatpush1.msra.mxu0 0.0
  %990 = vmatprep.subr.mxu0 0.0
  %991 = vmatpush1.msra.mxu0 0.0
  %992 = vmatprep.subr.mxu0 0.0
  %993 = vmatpush1.msra.mxu0 0.0
  %994 = vmatprep.subr.mxu0 0.0
  %995 = vmatpush1.msra.mxu0 0.0
  %996 = vmatprep.subr.mxu0 0.0
  %997 = vmatpush1.msra.mxu0 0.0
  %998 = vmatprep.subr.mxu0 0.0
  %999 = vmatpush1.msra.mxu0 0.0
  %1000 = vmatprep.subr.mxu0 0.0
  %1001 = vmatpush1.msra.mxu0 0.0
  %1002 = vmatprep.mubr.f32.mxu0 0.0
  %v1003 = vand.u32 %v64, 4294901760
  %v1004 = vsub.f32 %v64, %v1003
  %v1005 = vand.u32 %v1004, 4294901760
  %v1006 = vsub.f32 %v1004, %v1005
  %v1007 = vand.u32 %v1006, 4294901760
  %1008 = vmatmul.mubr.f32.gmra.mrb[0].mxu0 %v1007
  %v1009 = vpop.f32.mrb[0].mxu0
  %v1010 = vadd.f32 %v929, %v1009
  %v1011 = vpop.f32.mrb[0].mxu0
  %1012 = vdwg.mxu0
  %1013 = vmatprep.subr.mxu0 0.0
  %v1014 = vand.u32 %v49, 4294901760
  %v1015 = vsub.f32 %v49, %v1014
  %v1016 = vand.u32 %v1015, 4294901760
  %v1017 = vsub.f32 %v1015, %v1016
  %v1018 = vand.u32 %v1017, 4294901760
  %1019 = vmatpush1.msra.mxu0 %v1018
  %1020 = vmatprep.subr.mxu0 0.0
  %v1021 = vand.u32 %v50, 4294901760
  %v1022 = vsub.f32 %v50, %v1021
  %v1023 = vand.u32 %v1022, 4294901760
  %v1024 = vsub.f32 %v1022, %v1023
  %v1025 = vand.u32 %v1024, 4294901760
  %1026 = vmatpush1.msra.mxu0 %v1025
  %1027 = vmatprep.subr.mxu0 0.0
  %v1028 = vand.u32 %v51, 4294901760
  %v1029 = vsub.f32 %v51, %v1028
  %v1030 = vand.u32 %v1029, 4294901760
  %v1031 = vsub.f32 %v1029, %v1030
  %v1032 = vand.u32 %v1031, 4294901760
  %1033 = vmatpush1.msra.mxu0 %v1032
  %1034 = vmatprep.subr.mxu0 0.0
  %v1035 = vand.u32 %v52, 4294901760
  %v1036 = vsub.f32 %v52, %v1035
  %v1037 = vand.u32 %v1036, 4294901760
  %v1038 = vsub.f32 %v1036, %v1037
  %v1039 = vand.u32 %v1038, 4294901760
  %1040 = vmatpush1.msra.mxu0 %v1039
  %1041 = vmatprep.subr.mxu0 0.0
  %v1042 = vand.u32 %v53, 4294901760
  %v1043 = vsub.f32 %v53, %v1042
  %v1044 = vand.u32 %v1043, 4294901760
  %v1045 = vsub.f32 %v1043, %v1044
  %v1046 = vand.u32 %v1045, 4294901760
  %1047 = vmatpush1.msra.mxu0 %v1046
  %1048 = vmatprep.subr.mxu0 0.0
  %v1049 = vand.u32 %v68, 4294901760
  %v1050 = vsub.f32 %v68, %v1049
  %v1051 = vand.u32 %v1050, 4294901760
  %v1052 = vsub.f32 %v1050, %v1051
  %v1053 = vand.u32 %v1052, 4294901760
  %1054 = vmatpush1.msra.mxu0 %v1053
  %1055 = vmatprep.subr.mxu0 0.0
  %1056 = vmatpush1.msra.mxu0 0.0
  %1057 = vmatprep.subr.mxu0 0.0
  %1058 = vmatpush1.msra.mxu0 0.0
  %1059 = vmatprep.subr.mxu0 0.0
  %1060 = vmatpush1.msra.mxu0 0.0
  %1061 = vmatprep.subr.mxu0 0.0
  %1062 = vmatpush1.msra.mxu0 0.0
  %1063 = vmatprep.subr.mxu0 0.0
  %1064 = vmatpush1.msra.mxu0 0.0
  %1065 = vmatprep.subr.mxu0 0.0
  %1066 = vmatpush1.msra.mxu0 0.0
  %1067 = vmatprep.subr.mxu0 0.0
  %1068 = vmatpush1.msra.mxu0 0.0
  %1069 = vmatprep.subr.mxu0 0.0
  %1070 = vmatpush1.msra.mxu0 0.0
  %1071 = vmatprep.subr.mxu0 0.0
  %1072 = vmatpush1.msra.mxu0 0.0
  %1073 = vmatprep.subr.mxu0 0.0
  %1074 = vmatpush1.msra.mxu0 0.0
  %1075 = vmatprep.subr.mxu0 0.0
  %1076 = vmatpush1.msra.mxu0 0.0
  %1077 = vmatprep.subr.mxu0 0.0
  %1078 = vmatpush1.msra.mxu0 0.0
  %1079 = vmatprep.subr.mxu0 0.0
  %1080 = vmatpush1.msra.mxu0 0.0
  %1081 = vmatprep.subr.mxu0 0.0
  %1082 = vmatpush1.msra.mxu0 0.0
  %1083 = vmatprep.subr.mxu0 0.0
  %1084 = vmatpush1.msra.mxu0 0.0
  %1085 = vmatprep.subr.mxu0 0.0
  %1086 = vmatpush1.msra.mxu0 0.0
  %1087 = vmatprep.subr.mxu0 0.0
  %1088 = vmatpush1.msra.mxu0 0.0
  %1089 = vmatprep.subr.mxu0 0.0
  %1090 = vmatpush1.msra.mxu0 0.0
  %1091 = vmatprep.subr.mxu0 0.0
  %1092 = vmatpush1.msra.mxu0 0.0
  %1093 = vmatprep.subr.mxu0 0.0
  %1094 = vmatpush1.msra.mxu0 0.0
  %1095 = vmatprep.subr.mxu0 0.0
  %1096 = vmatpush1.msra.mxu0 0.0
  %1097 = vmatprep.subr.mxu0 0.0
  %1098 = vmatpush1.msra.mxu0 0.0
  %1099 = vmatprep.subr.mxu0 0.0
  %1100 = vmatpush1.msra.mxu0 0.0
  %1101 = vmatprep.subr.mxu0 0.0
  %1102 = vmatpush1.msra.mxu0 0.0
  %1103 = vmatprep.subr.mxu0 0.0
  %1104 = vmatpush1.msra.mxu0 0.0
  %1105 = vmatprep.subr.mxu0 0.0
  %1106 = vmatpush1.msra.mxu0 0.0
  %1107 = vmatprep.mubr.f32.mxu0 0.0
  %v1108 = vand.u32 %v64, 4294901760
  %1109 = vmatmul.mubr.f32.gmra.mrb[0].mxu0 %v1108
  %v1110 = vpop.f32.mrb[0].mxu0
  %v1111 = vadd.f32 %v1010, %v1110
  %v1112 = vpop.f32.mrb[0].mxu0
  %1113 = vdwg.mxu0
  %1114 = vmatprep.subr.mxu0 0.0
  %v1115 = vand.u32 %v49, 4294901760
  %v1116 = vsub.f32 %v49, %v1115
  %1117 = vmatpush1.msra.mxu0 %v1116
  %1118 = vmatprep.subr.mxu0 0.0
  %v1119 = vand.u32 %v50, 4294901760
  %v1120 = vsub.f32 %v50, %v1119
  %1121 = vmatpush1.msra.mxu0 %v1120
  %1122 = vmatprep.subr.mxu0 0.0
  %v1123 = vand.u32 %v51, 4294901760
  %v1124 = vsub.f32 %v51, %v1123
  %1125 = vmatpush1.msra.mxu0 %v1124
  %1126 = vmatprep.subr.mxu0 0.0
  %v1127 = vand.u32 %v52, 4294901760
  %v1128 = vsub.f32 %v52, %v1127
  %1129 = vmatpush1.msra.mxu0 %v1128
  %1130 = vmatprep.subr.mxu0 0.0
  %v1131 = vand.u32 %v53, 4294901760
  %v1132 = vsub.f32 %v53, %v1131
  %1133 = vmatpush1.msra.mxu0 %v1132
  %1134 = vmatprep.subr.mxu0 0.0
  %v1135 = vand.u32 %v68, 4294901760
  %v1136 = vsub.f32 %v68, %v1135
  %1137 = vmatpush1.msra.mxu0 %v1136
  %1138 = vmatprep.subr.mxu0 0.0
  %1139 = vmatpush1.msra.mxu0 0.0
  %1140 = vmatprep.subr.mxu0 0.0
  %1141 = vmatpush1.msra.mxu0 0.0
  %1142 = vmatprep.subr.mxu0 0.0
  %1143 = vmatpush1.msra.mxu0 0.0
  %1144 = vmatprep.subr.mxu0 0.0
  %1145 = vmatpush1.msra.mxu0 0.0
  %1146 = vmatprep.subr.mxu0 0.0
  %1147 = vmatpush1.msra.mxu0 0.0
  %1148 = vmatprep.subr.mxu0 0.0
  %1149 = vmatpush1.msra.mxu0 0.0
  %1150 = vmatprep.subr.mxu0 0.0
  %1151 = vmatpush1.msra.mxu0 0.0
  %1152 = vmatprep.subr.mxu0 0.0
  %1153 = vmatpush1.msra.mxu0 0.0
  %1154 = vmatprep.subr.mxu0 0.0
  %1155 = vmatpush1.msra.mxu0 0.0
  %1156 = vmatprep.subr.mxu0 0.0
  %1157 = vmatpush1.msra.mxu0 0.0
  %1158 = vmatprep.subr.mxu0 0.0
  %1159 = vmatpush1.msra.mxu0 0.0
  %1160 = vmatprep.subr.mxu0 0.0
  %1161 = vmatpush1.msra.mxu0 0.0
  %1162 = vmatprep.subr.mxu0 0.0
  %1163 = vmatpush1.msra.mxu0 0.0
  %1164 = vmatprep.subr.mxu0 0.0
  %1165 = vmatpush1.msra.mxu0 0.0
  %1166 = vmatprep.subr.mxu0 0.0
  %1167 = vmatpush1.msra.mxu0 0.0
  %1168 = vmatprep.subr.mxu0 0.0
  %1169 = vmatpush1.msra.mxu0 0.0
  %1170 = vmatprep.subr.mxu0 0.0
  %1171 = vmatpush1.msra.mxu0 0.0
  %1172 = vmatprep.subr.mxu0 0.0
  %1173 = vmatpush1.msra.mxu0 0.0
  %1174 = vmatprep.subr.mxu0 0.0
  %1175 = vmatpush1.msra.mxu0 0.0
  %1176 = vmatprep.subr.mxu0 0.0
  %1177 = vmatpush1.msra.mxu0 0.0
  %1178 = vmatprep.subr.mxu0 0.0
  %1179 = vmatpush1.msra.mxu0 0.0
  %1180 = vmatprep.subr.mxu0 0.0
  %1181 = vmatpush1.msra.mxu0 0.0
  %1182 = vmatprep.subr.mxu0 0.0
  %1183 = vmatpush1.msra.mxu0 0.0
  %1184 = vmatprep.subr.mxu0 0.0
  %1185 = vmatpush1.msra.mxu0 0.0
  %1186 = vmatprep.subr.mxu0 0.0
  %1187 = vmatpush1.msra.mxu0 0.0
  %1188 = vmatprep.subr.mxu0 0.0
  %1189 = vmatpush1.msra.mxu0 0.0
  %1190 = vmatprep.mubr.f32.mxu0 0.0
  %v1191 = vand.u32 %v64, 4294901760
  %v1192 = vsub.f32 %v64, %v1191
  %1193 = vmatmul.mubr.f32.gmra.mrb[0].mxu0 %v1192
  %v1194 = vpop.f32.mrb[0].mxu0
  %v1195 = vadd.f32 %v1111, %v1194
  %v1196 = vpop.f32.mrb[0].mxu0
  %1197 = vdwg.mxu0
  %1198 = vmatprep.subr.mxu0 0.0
  %v1199 = vand.u32 %v49, 4294901760
  %1200 = vmatpush1.msra.mxu0 %v1199
  %1201 = vmatprep.subr.mxu0 0.0
  %v1202 = vand.u32 %v50, 4294901760
  %1203 = vmatpush1.msra.mxu0 %v1202
  %1204 = vmatprep.subr.mxu0 0.0
  %v1205 = vand.u32 %v51, 4294901760
  %1206 = vmatpush1.msra.mxu0 %v1205
  %1207 = vmatprep.subr.mxu0 0.0
  %v1208 = vand.u32 %v52, 4294901760
  %1209 = vmatpush1.msra.mxu0 %v1208
  %1210 = vmatprep.subr.mxu0 0.0
  %v1211 = vand.u32 %v53, 4294901760
  %1212 = vmatpush1.msra.mxu0 %v1211
  %1213 = vmatprep.subr.mxu0 0.0
  %v1214 = vand.u32 %v68, 4294901760
  %1215 = vmatpush1.msra.mxu0 %v1214
  %1216 = vmatprep.subr.mxu0 0.0
  %1217 = vmatpush1.msra.mxu0 0.0
  %1218 = vmatprep.subr.mxu0 0.0
  %1219 = vmatpush1.msra.mxu0 0.0
  %1220 = vmatprep.subr.mxu0 0.0
  %1221 = vmatpush1.msra.mxu0 0.0
  %1222 = vmatprep.subr.mxu0 0.0
  %1223 = vmatpush1.msra.mxu0 0.0
  %1224 = vmatprep.subr.mxu0 0.0
  %1225 = vmatpush1.msra.mxu0 0.0
  %1226 = vmatprep.subr.mxu0 0.0
  %1227 = vmatpush1.msra.mxu0 0.0
  %1228 = vmatprep.subr.mxu0 0.0
  %1229 = vmatpush1.msra.mxu0 0.0
  %1230 = vmatprep.subr.mxu0 0.0
  %1231 = vmatpush1.msra.mxu0 0.0
  %1232 = vmatprep.subr.mxu0 0.0
  %1233 = vmatpush1.msra.mxu0 0.0
  %1234 = vmatprep.subr.mxu0 0.0
  %1235 = vmatpush1.msra.mxu0 0.0
  %1236 = vmatprep.subr.mxu0 0.0
  %1237 = vmatpush1.msra.mxu0 0.0
  %1238 = vmatprep.subr.mxu0 0.0
  %1239 = vmatpush1.msra.mxu0 0.0
  %1240 = vmatprep.subr.mxu0 0.0
  %1241 = vmatpush1.msra.mxu0 0.0
  %1242 = vmatprep.subr.mxu0 0.0
  %1243 = vmatpush1.msra.mxu0 0.0
  %1244 = vmatprep.subr.mxu0 0.0
  %1245 = vmatpush1.msra.mxu0 0.0
  %1246 = vmatprep.subr.mxu0 0.0
  %1247 = vmatpush1.msra.mxu0 0.0
  %1248 = vmatprep.subr.mxu0 0.0
  %1249 = vmatpush1.msra.mxu0 0.0
  %1250 = vmatprep.subr.mxu0 0.0
  %1251 = vmatpush1.msra.mxu0 0.0
  %1252 = vmatprep.subr.mxu0 0.0
  %1253 = vmatpush1.msra.mxu0 0.0
  %1254 = vmatprep.subr.mxu0 0.0
  %1255 = vmatpush1.msra.mxu0 0.0
  %1256 = vmatprep.subr.mxu0 0.0
  %1257 = vmatpush1.msra.mxu0 0.0
  %1258 = vmatprep.subr.mxu0 0.0
  %1259 = vmatpush1.msra.mxu0 0.0
  %1260 = vmatprep.subr.mxu0 0.0
  %1261 = vmatpush1.msra.mxu0 0.0
  %1262 = vmatprep.subr.mxu0 0.0
  %1263 = vmatpush1.msra.mxu0 0.0
  %1264 = vmatprep.subr.mxu0 0.0
  %1265 = vmatpush1.msra.mxu0 0.0
  %1266 = vmatprep.subr.mxu0 0.0
  %1267 = vmatpush1.msra.mxu0 0.0
  %1268 = vmatprep.mubr.f32.mxu0 0.0
  %v1269 = vand.u32 %v64, 4294901760
  %v1270 = vsub.f32 %v64, %v1269
  %v1271 = vand.u32 %v1270, 4294901760
  %1272 = vmatmul.mubr.f32.gmra.mrb[0].mxu0 %v1271
  %v1273 = vpop.f32.mrb[0].mxu0
  %v1274 = vadd.f32 %v1195, %v1273
  %v1275 = vpop.f32.mrb[0].mxu0
  %1276 = vdwg.mxu0
  %1277 = vmatprep.subr.mxu0 0.0
  %v1278 = vand.u32 %v49, 4294901760
  %v1279 = vsub.f32 %v49, %v1278
  %v1280 = vand.u32 %v1279, 4294901760
  %1281 = vmatpush1.msra.mxu0 %v1280
  %1282 = vmatprep.subr.mxu0 0.0
  %v1283 = vand.u32 %v50, 4294901760
  %v1284 = vsub.f32 %v50, %v1283
  %v1285 = vand.u32 %v1284, 4294901760
  %1286 = vmatpush1.msra.mxu0 %v1285
  %1287 = vmatprep.subr.mxu0 0.0
  %v1288 = vand.u32 %v51, 4294901760
  %v1289 = vsub.f32 %v51, %v1288
  %v1290 = vand.u32 %v1289, 4294901760
  %1291 = vmatpush1.msra.mxu0 %v1290
  %1292 = vmatprep.subr.mxu0 0.0
  %v1293 = vand.u32 %v52, 4294901760
  %v1294 = vsub.f32 %v52, %v1293
  %v1295 = vand.u32 %v1294, 4294901760
  %1296 = vmatpush1.msra.mxu0 %v1295
  %1297 = vmatprep.subr.mxu0 0.0
  %v1298 = vand.u32 %v53, 4294901760
  %v1299 = vsub.f32 %v53, %v1298
  %v1300 = vand.u32 %v1299, 4294901760
  %1301 = vmatpush1.msra.mxu0 %v1300
  %1302 = vmatprep.subr.mxu0 0.0
  %v1303 = vand.u32 %v68, 4294901760
  %v1304 = vsub.f32 %v68, %v1303
  %v1305 = vand.u32 %v1304, 4294901760
  %1306 = vmatpush1.msra.mxu0 %v1305
  %1307 = vmatprep.subr.mxu0 0.0
  %1308 = vmatpush1.msra.mxu0 0.0
  %1309 = vmatprep.subr.mxu0 0.0
  %1310 = vmatpush1.msra.mxu0 0.0
  %1311 = vmatprep.subr.mxu0 0.0
  %1312 = vmatpush1.msra.mxu0 0.0
  %1313 = vmatprep.subr.mxu0 0.0
  %1314 = vmatpush1.msra.mxu0 0.0
  %1315 = vmatprep.subr.mxu0 0.0
  %1316 = vmatpush1.msra.mxu0 0.0
  %1317 = vmatprep.subr.mxu0 0.0
  %1318 = vmatpush1.msra.mxu0 0.0
  %1319 = vmatprep.subr.mxu0 0.0
  %1320 = vmatpush1.msra.mxu0 0.0
  %1321 = vmatprep.subr.mxu0 0.0
  %1322 = vmatpush1.msra.mxu0 0.0
  %1323 = vmatprep.subr.mxu0 0.0
  %1324 = vmatpush1.msra.mxu0 0.0
  %1325 = vmatprep.subr.mxu0 0.0
  %1326 = vmatpush1.msra.mxu0 0.0
  %1327 = vmatprep.subr.mxu0 0.0
  %1328 = vmatpush1.msra.mxu0 0.0
  %1329 = vmatprep.subr.mxu0 0.0
  %1330 = vmatpush1.msra.mxu0 0.0
  %1331 = vmatprep.subr.mxu0 0.0
  %1332 = vmatpush1.msra.mxu0 0.0
  %1333 = vmatprep.subr.mxu0 0.0
  %1334 = vmatpush1.msra.mxu0 0.0
  %1335 = vmatprep.subr.mxu0 0.0
  %1336 = vmatpush1.msra.mxu0 0.0
  %1337 = vmatprep.subr.mxu0 0.0
  %1338 = vmatpush1.msra.mxu0 0.0
  %1339 = vmatprep.subr.mxu0 0.0
  %1340 = vmatpush1.msra.mxu0 0.0
  %1341 = vmatprep.subr.mxu0 0.0
  %1342 = vmatpush1.msra.mxu0 0.0
  %1343 = vmatprep.subr.mxu0 0.0
  %1344 = vmatpush1.msra.mxu0 0.0
  %1345 = vmatprep.subr.mxu0 0.0
  %1346 = vmatpush1.msra.mxu0 0.0
  %1347 = vmatprep.subr.mxu0 0.0
  %1348 = vmatpush1.msra.mxu0 0.0
  %1349 = vmatprep.subr.mxu0 0.0
  %1350 = vmatpush1.msra.mxu0 0.0
  %1351 = vmatprep.subr.mxu0 0.0
  %1352 = vmatpush1.msra.mxu0 0.0
  %1353 = vmatprep.subr.mxu0 0.0
  %1354 = vmatpush1.msra.mxu0 0.0
  %1355 = vmatprep.subr.mxu0 0.0
  %1356 = vmatpush1.msra.mxu0 0.0
  %1357 = vmatprep.subr.mxu0 0.0
  %1358 = vmatpush1.msra.mxu0 0.0
  %1359 = vmatprep.mubr.f32.mxu0 0.0
  %v1360 = vand.u32 %v64, 4294901760
  %1361 = vmatmul.mubr.f32.gmra.mrb[0].mxu0 %v1360
  %v1362 = vpop.f32.mrb[0].mxu0
  %v1363 = vadd.f32 %v1274, %v1362
  %v1364 = vpop.f32.mrb[0].mxu0
  %1365 = vdwg.mxu0
  %1366 = vmatprep.subr.mxu0 0.0
  %v1367 = vand.u32 %v49, 4294901760
  %1368 = vmatpush1.msra.mxu0 %v1367
  %1369 = vmatprep.subr.mxu0 0.0
  %v1370 = vand.u32 %v50, 4294901760
  %1371 = vmatpush1.msra.mxu0 %v1370
  %1372 = vmatprep.subr.mxu0 0.0
  %v1373 = vand.u32 %v51, 4294901760
  %1374 = vmatpush1.msra.mxu0 %v1373
  %1375 = vmatprep.subr.mxu0 0.0
  %v1376 = vand.u32 %v52, 4294901760
  %1377 = vmatpush1.msra.mxu0 %v1376
  %1378 = vmatprep.subr.mxu0 0.0
  %v1379 = vand.u32 %v53, 4294901760
  %1380 = vmatpush1.msra.mxu0 %v1379
  %1381 = vmatprep.subr.mxu0 0.0
  %v1382 = vand.u32 %v68, 4294901760
  %1383 = vmatpush1.msra.mxu0 %v1382
  %1384 = vmatprep.subr.mxu0 0.0
  %1385 = vmatpush1.msra.mxu0 0.0
  %1386 = vmatprep.subr.mxu0 0.0
  %1387 = vmatpush1.msra.mxu0 0.0
  %1388 = vmatprep.subr.mxu0 0.0
  %1389 = vmatpush1.msra.mxu0 0.0
  %1390 = vmatprep.subr.mxu0 0.0
  %1391 = vmatpush1.msra.mxu0 0.0
  %1392 = vmatprep.subr.mxu0 0.0
  %1393 = vmatpush1.msra.mxu0 0.0
  %1394 = vmatprep.subr.mxu0 0.0
  %1395 = vmatpush1.msra.mxu0 0.0
  %1396 = vmatprep.subr.mxu0 0.0
  %1397 = vmatpush1.msra.mxu0 0.0
  %1398 = vmatprep.subr.mxu0 0.0
  %1399 = vmatpush1.msra.mxu0 0.0
  %1400 = vmatprep.subr.mxu0 0.0
  %1401 = vmatpush1.msra.mxu0 0.0
  %1402 = vmatprep.subr.mxu0 0.0
  %1403 = vmatpush1.msra.mxu0 0.0
  %1404 = vmatprep.subr.mxu0 0.0
  %1405 = vmatpush1.msra.mxu0 0.0
  %1406 = vmatprep.subr.mxu0 0.0
  %1407 = vmatpush1.msra.mxu0 0.0
  %1408 = vmatprep.subr.mxu0 0.0
  %1409 = vmatpush1.msra.mxu0 0.0
  %1410 = vmatprep.subr.mxu0 0.0
  %1411 = vmatpush1.msra.mxu0 0.0
  %1412 = vmatprep.subr.mxu0 0.0
  %1413 = vmatpush1.msra.mxu0 0.0
  %1414 = vmatprep.subr.mxu0 0.0
  %1415 = vmatpush1.msra.mxu0 0.0
  %1416 = vmatprep.subr.mxu0 0.0
  %1417 = vmatpush1.msra.mxu0 0.0
  %1418 = vmatprep.subr.mxu0 0.0
  %1419 = vmatpush1.msra.mxu0 0.0
  %1420 = vmatprep.subr.mxu0 0.0
  %1421 = vmatpush1.msra.mxu0 0.0
  %1422 = vmatprep.subr.mxu0 0.0
  %1423 = vmatpush1.msra.mxu0 0.0
  %1424 = vmatprep.subr.mxu0 0.0
  %1425 = vmatpush1.msra.mxu0 0.0
  %1426 = vmatprep.subr.mxu0 0.0
  %1427 = vmatpush1.msra.mxu0 0.0
  %1428 = vmatprep.subr.mxu0 0.0
  %1429 = vmatpush1.msra.mxu0 0.0
  %1430 = vmatprep.subr.mxu0 0.0
  %1431 = vmatpush1.msra.mxu0 0.0
  %1432 = vmatprep.subr.mxu0 0.0
  %1433 = vmatpush1.msra.mxu0 0.0
  %1434 = vmatprep.subr.mxu0 0.0
  %1435 = vmatpush1.msra.mxu0 0.0
  %1436 = vmatprep.mubr.f32.mxu0 0.0
  %v1437 = vand.u32 %v64, 4294901760
  %1438 = vmatmul.mubr.f32.gmra.mrb[0].mxu0 %v1437
  %v1439 = vpop.f32.mrb[0].mxu0
  %v1440 = vadd.f32 %v1363, %v1439
  %v1441 = vpop.f32.mrb[0].mxu0
  %1442 = vdwg.mxu0
  %vm1443 = vcmask 31744
  %1444 = vst.msk [vmem:[%s3] sm:$0xff] %vm1443, %v1440
  // Predicated region
  $region14: #{logistic_regression_forward.1} parent=0 // pred_check
    _
  $region15: #{logistic_regression_forward.1} parent=0 // pred_check_branch
    %1446 = sbr.rel (0) target = $region17
  $region16: #{logistic_regression_forward.1} parent=0 // pred_region
    _
  $region17: #{logistic_regression_forward.1} parent=0 // pred_fallthru
    _
  // Predicated region
  $region18: #{logistic_regression_forward.1} parent=0 // pred_check
    _
  $region19: #{logistic_regression_forward.1} parent=0 // pred_check_branch
    %1448 = sbr.rel (0) target = $region21
  $region20: #{logistic_regression_forward.1} parent=0 // pred_region
    _
  $region21: #{logistic_regression_forward.1} parent=0 // pred_fallthru
    _

</llo_original>
